<compile_context>
chip_gen: v7x
topology: tpu7x:2x2x1
jax: 0.10.0
libtpu: 0.0.40
codegen_flags: <defaults>
</compile_context>

<pallas_src>
import functools

import jax
import jax.numpy as jnp
from jax.experimental import pallas as pl
from jax.experimental.pallas import tpu as pltpu


def fpn_kernel(x_ref, w_ref, b_ref, mmap_ref, emap_ref, out_ref):
    x = x_ref[...]                                   # (TB, 256) f32
    w = w_ref[...]                                   # (256, Q)  f32
    b = b_ref[...]                                   # (1, Q)    f32

    # fc1: logits = x @ W^T + b  (W passed pre-transposed as (256, Q))
    logits = jnp.dot(x, w, preferred_element_type=jnp.float32) + b   # (TB, Q)

    # Numerically stable softmax / log_softmax over the last dim.
    m = jnp.max(logits, axis=-1, keepdims=True)
    z = logits - m
    ez = jnp.exp(z)
    se = jnp.sum(ez, axis=-1, keepdims=True)
    inv_se = pl.reciprocal(se, approx=False)
    probs = ez * inv_se                              # softmax probs
    log_q = z - jnp.log(se)                          # log-probs (quantile)
    lqp = log_q * probs                              # per-element entropy terms

    # Two small MXU matmuls against grid-invariant constant maps produce the
    # whole packed output slab (tau | tau_hat | entropy | zero pad) at once:
    #   m_map deposits cumsum / leading-zero / midpoints into lanes [0..2Q],
    #   e_map deposits -sum(log_q*probs) into lane 2Q+1.
    slab = jnp.dot(probs, mmap_ref[...], preferred_element_type=jnp.float32)
    slab = slab + jnp.dot(lqp, emap_ref[...], preferred_element_type=jnp.float32)

    # Single full (lane-dense, unmasked) store.
    out_ref[...] = slab


def _round_up(v, m):
    return ((v + m - 1) // m) * m


def _build_maps(q, lanes):
    """Constant (Q, lanes) matrices mapping probs / (log_q*probs) to the slab."""
    row = jnp.arange(q, dtype=jnp.int32)[:, None]          # (Q, 1)
    col = jnp.arange(lanes, dtype=jnp.int32)[None, :]      # (1, lanes)

    # cols j in [0, Q]       : M[k, j] = 1 if k < j                 -> tau
    tau_part = ((col <= q) & (row < col)).astype(jnp.float32)
    # cols Q+1+j, j in [0,Q) : M[k, .] = 1 if k < j, 0.5 if k == j  -> tau_hat
    jj = col - (q + 1)
    th_part = jnp.where(
        (col > q) & (col <= 2 * q),
        jnp.where(row < jj, 1.0, jnp.where(row == jj, 0.5, 0.0)),
        0.0,
    ).astype(jnp.float32)
    m_map = tau_part + th_part                              # (Q, lanes)

    # col 2Q+1 : E[k, 2Q+1] = -1   -> entropy = -sum(log_q * probs)
    e_map = jnp.broadcast_to(
        jnp.where(col == 2 * q + 1, -1.0, 0.0).astype(jnp.float32), (q, lanes)
    )
    return m_map, e_map


@functools.partial(jax.jit, static_argnums=(3,))
def fpn_forward(x, weight_t, bias, n_quantiles):
    """x: (..., 256) f32; weight_t: (256, Q) f32; bias: (Q,) f32.

    Returns (tau, tau_hat, entropy) matching the PyTorch FPN forward.
    Supports 2D (B, 256) and 3D (B, T, 256) inputs like the original module.
    """
    q = n_quantiles
    lanes = _round_up(2 * q + 2, 128)                # packed-output lane width

    lead_shape = x.shape[:-1]
    feat = x.shape[-1]
    x2d = x.reshape(-1, feat)
    b_rows = x2d.shape[0]

    # Batch tiling: multiple of 8 sublanes, up to 1024 rows per grid step.
    tile_b = min(1024, _round_up(max(b_rows, 1), 8))
    b_pad = _round_up(max(b_rows, 1), tile_b)
    if b_pad != b_rows:
        x2d = jnp.pad(x2d, ((0, b_pad - b_rows), (0, 0)))

    bias2d = bias.reshape(1, q)
    m_map, e_map = _build_maps(q, lanes)
    n_blocks = b_pad // tile_b

    packed = pl.pallas_call(
        fpn_kernel,
        out_shape=jax.ShapeDtypeStruct((b_pad, lanes), jnp.float32),
        grid=(n_blocks,),
        in_specs=[
            pl.BlockSpec((tile_b, feat), lambda i: (i, 0)),   # x tile
            pl.BlockSpec((feat, q), lambda i: (0, 0)),        # W (grid-invariant)
            pl.BlockSpec((1, q), lambda i: (0, 0)),           # bias (grid-invariant)
            pl.BlockSpec((q, lanes), lambda i: (0, 0)),       # tau/tau_hat map
            pl.BlockSpec((q, lanes), lambda i: (0, 0)),       # entropy map
        ],
        out_specs=pl.BlockSpec((tile_b, lanes), lambda i: (i, 0)),
        compiler_params=pltpu.CompilerParams(
            dimension_semantics=("parallel",),
        ),
    )(x2d, weight_t, bias2d, m_map, e_map)

    packed = packed[:b_rows]
    tau = packed[:, : q + 1].reshape(*lead_shape, q + 1)
    tau_hat = packed[:, q + 1 : 2 * q + 1].reshape(*lead_shape, q)
    entropy = packed[:, 2 * q + 1 : 2 * q + 2].reshape(*lead_shape, 1)
    return tau, tau_hat, entropy


def _xavier_uniform(key, shape, gain):
    # PyTorch xavier_uniform_ on weight of shape (out_features, in_features)
    fan_out, fan_in = shape
    a = gain * jnp.sqrt(6.0 / (fan_in + fan_out))
    return jax.random.uniform(key, shape, minval=-a, maxval=a, dtype=jnp.float32)


def _reference(x, weight, bias):
    logits = x @ weight.T + bias
    log_q = jax.nn.log_softmax(logits, axis=-1)
    probs = jnp.exp(log_q)
    zeros = jnp.zeros(x.shape[:-1] + (1,), jnp.float32)
    tau = jnp.concatenate([zeros, jnp.cumsum(probs, axis=-1)], axis=-1)
    tau_hat = (tau[..., :-1] + tau[..., 1:]) / 2.0
    ent = -jnp.sum(log_q * probs, axis=-1, keepdims=True)
    return tau, tau_hat, ent


if __name__ == "__main__":
    n_quantiles = 32
    batch = 8
    in_features = 256

    key = jax.random.PRNGKey(0)
    k_w, k_b, k_x, k_x3 = jax.random.split(key, 4)

    # Deterministic parameter init mirroring the PyTorch module.
    weight = _xavier_uniform(k_w, (n_quantiles, in_features), gain=0.01)  # (Q, 256)
    bound = 1.0 / jnp.sqrt(float(in_features))
    bias = jax.random.uniform(
        k_b, (n_quantiles,), minval=-bound, maxval=bound, dtype=jnp.float32
    )

    # --- 2D input path ---
    x = jax.random.normal(k_x, (batch, in_features), dtype=jnp.float32)
    tau, tau_hat, entropy = fpn_forward(x, weight.T, bias, n_quantiles)
    jax.block_until_ready((tau, tau_hat, entropy))

    tau_r, tau_hat_r, ent_r = _reference(x, weight, bias)
    assert tau.shape == (batch, n_quantiles + 1)
    assert tau_hat.shape == (batch, n_quantiles)
    assert entropy.shape == (batch, 1)
    assert jnp.allclose(tau, tau_r, atol=1e-5), "tau mismatch"
    assert jnp.allclose(tau_hat, tau_hat_r, atol=1e-5), "tau_hat mismatch"
    assert jnp.allclose(entropy, ent_r, atol=1e-5), "entropy mismatch"

    # --- 3D input path (module also supports (B, T, 256)) ---
    x3 = jax.random.normal(k_x3, (2, 3, in_features), dtype=jnp.float32)
    tau3, tau_hat3, ent3 = fpn_forward(x3, weight.T, bias, n_quantiles)
    jax.block_until_ready((tau3, tau_hat3, ent3))
    tau3_r, tau_hat3_r, ent3_r = _reference(x3, weight, bias)
    assert jnp.allclose(tau3, tau3_r, atol=1e-5), "3D tau mismatch"
    assert jnp.allclose(tau_hat3, tau_hat3_r, atol=1e-5), "3D tau_hat mismatch"
    assert jnp.allclose(ent3, ent3_r, atol=1e-5), "3D entropy mismatch"

    print("KERNEL_OK")
</pallas_src>

<mosaic_0001>
module attributes {stable_mosaic.version = 11 : i64} {
  func.func @fpn_kernel(%arg0: i32, %arg1: memref<8x256xf32, #tpu.memory_space<vmem>>, %arg2: memref<256x32xf32, #tpu.memory_space<vmem>>, %arg3: memref<1x32xf32, #tpu.memory_space<vmem>>, %arg4: memref<32x128xf32, #tpu.memory_space<vmem>>, %arg5: memref<32x128xf32, #tpu.memory_space<vmem>>, %arg6: memref<8x128xf32, #tpu.memory_space<vmem>>) attributes {dimension_semantics = [#tpu.dimension_semantics<parallel>], iteration_bounds = array<i64: 1>, scalar_prefetch = 0 : i64, scratch_operands = 0 : i64, tpu.core_type = #tpu.core_type<tc>, window_params = [{transform_indices = @transform_0, window_bounds = array<i64: 8, 256>}, {pipeline_mode = #tpu.pipeline_mode<synchronous>, transform_indices = @transform_1, window_bounds = array<i64: 256, 32>}, {pipeline_mode = #tpu.pipeline_mode<synchronous>, transform_indices = @transform_2, window_bounds = array<i64: 1, 32>}, {pipeline_mode = #tpu.pipeline_mode<synchronous>, transform_indices = @transform_3, window_bounds = array<i64: 32, 128>}, {pipeline_mode = #tpu.pipeline_mode<synchronous>, transform_indices = @transform_4, window_bounds = array<i64: 32, 128>}, {transform_indices = @transform_5, window_bounds = array<i64: 8, 128>}]} {
    %c0 = arith.constant 0 : index
    %c0_0 = arith.constant 0 : index
    %0 = vector.load %arg1[%c0, %c0_0] : memref<8x256xf32, #tpu.memory_space<vmem>>, vector<8x256xf32>
    %c0_1 = arith.constant 0 : index
    %c0_2 = arith.constant 0 : index
    %1 = vector.load %arg2[%c0_1, %c0_2] : memref<256x32xf32, #tpu.memory_space<vmem>>, vector<256x32xf32>
    %c0_3 = arith.constant 0 : index
    %c0_4 = arith.constant 0 : index
    %2 = vector.load %arg3[%c0_3, %c0_4] : memref<1x32xf32, #tpu.memory_space<vmem>>, vector<1x32xf32>
    %cst = arith.constant dense<0.000000e+00> : vector<8x32xf32>
    %3 = tpu.matmul %0, %1, %cst {dimension_numbers = #tpu.dot_dimension_numbers<[1], [0], [0], [1], [0, 0, 1, 1], [], []>} : vector<8x256xf32>, vector<256x32xf32>, vector<8x32xf32> -> vector<8x32xf32>
    %4 = vector.broadcast %2 : vector<1x32xf32> to vector<8x32xf32>
    %5 = arith.addf %3, %4 : vector<8x32xf32>
    %cst_5 = arith.constant dense<0xFF800000> : vector<8xf32>
    %6 = vector.multi_reduction <maximumf>, %5, %cst_5 [1] : vector<8x32xf32> to vector<8xf32>
    %7 = vector.shape_cast %6 : vector<8xf32> to vector<8x1xf32>
    %8 = vector.broadcast %7 : vector<8x1xf32> to vector<8x32xf32>
    %9 = arith.subf %5, %8 : vector<8x32xf32>
    %10 = math.exp %9 : vector<8x32xf32>
    %cst_6 = arith.constant dense<0.000000e+00> : vector<8xf32>
    %11 = vector.multi_reduction <add>, %10, %cst_6 [1] : vector<8x32xf32> to vector<8xf32>
    %12 = vector.shape_cast %11 : vector<8xf32> to vector<8x1xf32>
    %13 = tpu.reciprocal %12 : vector<8x1xf32> -> vector<8x1xf32>
    %14 = vector.broadcast %13 : vector<8x1xf32> to vector<8x32xf32>
    %15 = arith.mulf %10, %14 : vector<8x32xf32>
    %16 = math.log %12 : vector<8x1xf32>
    %17 = vector.broadcast %16 : vector<8x1xf32> to vector<8x32xf32>
    %18 = arith.subf %9, %17 : vector<8x32xf32>
    %19 = arith.mulf %18, %15 : vector<8x32xf32>
    %c0_7 = arith.constant 0 : index
    %c0_8 = arith.constant 0 : index
    %20 = vector.load %arg4[%c0_7, %c0_8] : memref<32x128xf32, #tpu.memory_space<vmem>>, vector<32x128xf32>
    %cst_9 = arith.constant dense<0.000000e+00> : vector<8x128xf32>
    %21 = tpu.matmul %15, %20, %cst_9 {dimension_numbers = #tpu.dot_dimension_numbers<[1], [0], [0], [1], [0, 0, 1, 1], [], []>} : vector<8x32xf32>, vector<32x128xf32>, vector<8x128xf32> -> vector<8x128xf32>
    %c0_10 = arith.constant 0 : index
    %c0_11 = arith.constant 0 : index
    %22 = vector.load %arg5[%c0_10, %c0_11] : memref<32x128xf32, #tpu.memory_space<vmem>>, vector<32x128xf32>
    %cst_12 = arith.constant dense<0.000000e+00> : vector<8x128xf32>
    %23 = tpu.matmul %19, %22, %cst_12 {dimension_numbers = #tpu.dot_dimension_numbers<[1], [0], [0], [1], [0, 0, 1, 1], [], []>} : vector<8x32xf32>, vector<32x128xf32>, vector<8x128xf32> -> vector<8x128xf32>
    %24 = arith.addf %21, %23 : vector<8x128xf32>
    %c0_13 = arith.constant 0 : index
    %c0_14 = arith.constant 0 : index
    %25 = vector.load %arg6[%c0_13, %c0_14] : memref<8x128xf32, #tpu.memory_space<vmem>>, vector<8x128xf32>
    tpu.vector_store %arg6[%c0_13, %c0_14], %24 {strides = array<i32>} : memref<8x128xf32, #tpu.memory_space<vmem>>, vector<8x128xf32>,
    return
  }
  func.func @transform_0(%arg0: i32) -> (i32, i32) {
    %c0_i32 = arith.constant 0 : i32
    %c0_i32_0 = arith.constant 0 : i32
    return %arg0, %c0_i32 : i32, i32
  }
  func.func @transform_1(%arg0: i32) -> (i32, i32) {
    %c0_i32 = arith.constant 0 : i32
    %c0_i32_0 = arith.constant 0 : i32
    %c0_i32_1 = arith.constant 0 : i32
    return %c0_i32, %c0_i32_0 : i32, i32
  }
  func.func @transform_2(%arg0: i32) -> (i32, i32) {
    %c0_i32 = arith.constant 0 : i32
    %c0_i32_0 = arith.constant 0 : i32
    %c0_i32_1 = arith.constant 0 : i32
    return %c0_i32, %c0_i32_0 : i32, i32
  }
  func.func @transform_3(%arg0: i32) -> (i32, i32) {
    %c0_i32 = arith.constant 0 : i32
    %c0_i32_0 = arith.constant 0 : i32
    %c0_i32_1 = arith.constant 0 : i32
    return %c0_i32, %c0_i32_0 : i32, i32
  }
  func.func @transform_4(%arg0: i32) -> (i32, i32) {
    %c0_i32 = arith.constant 0 : i32
    %c0_i32_0 = arith.constant 0 : i32
    %c0_i32_1 = arith.constant 0 : i32
    return %c0_i32, %c0_i32_0 : i32, i32
  }
  func.func @transform_5(%arg0: i32) -> (i32, i32) {
    %c0_i32 = arith.constant 0 : i32
    %c0_i32_0 = arith.constant 0 : i32
    return %arg0, %c0_i32 : i32, i32
  }
}

</mosaic_0001>

<llo_original>
// kernel: fpn_forward.1
$region0: #{fpn_forward.1}
  #allocation0 [shape = 'u32[]', space=smem, size = 0x4, offset = 0x4, fixed_abs, tag = 'smem constant byte address 0x4 - core index']
  #allocation1 [shape = 'u32[144,128]{1,0:T(1,128)}', space=vmem, size = 0x12000, scoped, tag = 'internal scratch']
  %s0 = inlined_call_operand.vmem [shape: f32[8,256], index: 0, kind: input, shape index: {}]
  %s1 = inlined_call_operand.vmem [shape: f32[256,32], index: 1, kind: input, shape index: {}]
  %s2 = inlined_call_operand.vmem [shape: f32[1,32], index: 2, kind: input, shape index: {}]
  %s3 = inlined_call_operand.vmem [shape: f32[32,128], index: 3, kind: input, shape index: {}]
  %s4 = inlined_call_operand.vmem [shape: f32[32,128], index: 4, kind: input, shape index: {}]
  %s5 = inlined_call_operand.vmem [shape: f32[8,128], index: 5, kind: output, shape index: {}]
  %s6 = sld [smem:[#allocation0]]
  $region30: #{fpn_forward.1} parent=0
    _
  %s8 = ssub.s32 1, %s6
  %s9 = scalar_select 0, %s8, %s6
  // Predicated region
  $region2: #{fpn_forward.1} parent=0 // pred_check
    _
  $region3: #{fpn_forward.1} parent=0 // pred_check_branch
    %11 = sbr.rel (0) target = $region5
  $region4: #{fpn_forward.1} parent=0 // pred_region
    _
  $region5: #{fpn_forward.1} parent=0 // pred_fallthru
    _
  // Predicated region
  $region6: #{fpn_forward.1} parent=0 // pred_check
    _
  $region7: #{fpn_forward.1} parent=0 // pred_check_branch
    %13 = sbr.rel (0) target = $region9
  $region8: #{fpn_forward.1} parent=0 // pred_region
    _
  $region9: #{fpn_forward.1} parent=0 // pred_fallthru
    _
  // Predicated region
  $region10: #{fpn_forward.1} parent=0 // pred_check
    _
  $region11: #{fpn_forward.1} parent=0 // pred_check_branch
    %15 = sbr.rel (0) target = $region13
  $region12: #{fpn_forward.1} parent=0 // pred_region
    _
  $region13: #{fpn_forward.1} parent=0 // pred_fallthru
    _
  // Predicated region
  $region14: #{fpn_forward.1} parent=0 // pred_check
    _
  $region15: #{fpn_forward.1} parent=0 // pred_check_branch
    %17 = sbr.rel (0) target = $region17
  $region16: #{fpn_forward.1} parent=0 // pred_region
    _
  $region17: #{fpn_forward.1} parent=0 // pred_fallthru
    _
  // Predicated region
  $region18: #{fpn_forward.1} parent=0 // pred_check
    _
  $region19: #{fpn_forward.1} parent=0 // pred_check_branch
    %19 = sbr.rel (0) target = $region21
  $region20: #{fpn_forward.1} parent=0 // pred_region
    _
  $region21: #{fpn_forward.1} parent=0 // pred_fallthru
    _
  %v20 = vld [vmem:[%s0] sm:$0xff]
  %v21 = vld [vmem:[%s0 + $0x8] sm:$0xff]
  %v22 = vld [vmem:[%s1] sm:$0xff]
  %v23 = vld [vmem:[%s1 + $0x8] sm:$0xff]
  %v24 = vld [vmem:[%s1 + $0x10] sm:$0xff]
  %v25 = vld [vmem:[%s1 + $0x18] sm:$0xff]
  %v26 = vld [vmem:[%s1 + $0x20] sm:$0xff]
  %v27 = vld [vmem:[%s1 + $0x28] sm:$0xff]
  %v28 = vld [vmem:[%s1 + $0x30] sm:$0xff]
  %v29 = vld [vmem:[%s1 + $0x38] sm:$0xff]
  %v30 = vld [vmem:[%s1 + $0x40] sm:$0xff]
  %v31 = vld [vmem:[%s1 + $0x48] sm:$0xff]
  %v32 = vld [vmem:[%s1 + $0x50] sm:$0xff]
  %v33 = vld [vmem:[%s1 + $0x58] sm:$0xff]
  %v34 = vld [vmem:[%s1 + $0x60] sm:$0xff]
  %v35 = vld [vmem:[%s1 + $0x68] sm:$0xff]
  %v36 = vld [vmem:[%s1 + $0x70] sm:$0xff]
  %v37 = vld [vmem:[%s1 + $0x78] sm:$0xff]
  %v38 = vld [vmem:[%s1 + $0x80] sm:$0xff]
  %v39 = vld [vmem:[%s1 + $0x88] sm:$0xff]
  %v40 = vld [vmem:[%s1 + $0x90] sm:$0xff]
  %v41 = vld [vmem:[%s1 + $0x98] sm:$0xff]
  %v42 = vld [vmem:[%s1 + $0xa0] sm:$0xff]
  %v43 = vld [vmem:[%s1 + $0xa8] sm:$0xff]
  %v44 = vld [vmem:[%s1 + $0xb0] sm:$0xff]
  %v45 = vld [vmem:[%s1 + $0xb8] sm:$0xff]
  %v46 = vld [vmem:[%s1 + $0xc0] sm:$0xff]
  %v47 = vld [vmem:[%s1 + $0xc8] sm:$0xff]
  %v48 = vld [vmem:[%s1 + $0xd0] sm:$0xff]
  %v49 = vld [vmem:[%s1 + $0xd8] sm:$0xff]
  %v50 = vld [vmem:[%s1 + $0xe0] sm:$0xff]
  %v51 = vld [vmem:[%s1 + $0xe8] sm:$0xff]
  %v52 = vld [vmem:[%s1 + $0xf0] sm:$0xff]
  %v53 = vld [vmem:[%s1 + $0xf8] sm:$0xff]
  %v54 = vld [vmem:[%s2] sm:$0x1]
  %v56 = vlaneseq
  %v57 = vshrl.u32 %v56, 7
  %v58 = vsub.s32 0, %v57
  %v59 = vrot.slane %v54, %v58
  %61 = vmatprep.subr.mxu0 0.0
  %62 = vmatpush1.msra.mxu0 %v22
  %63 = vmatprep.subr.mxu0 0.0
  %64 = vmatpush1.msra.mxu0 %v23
  %65 = vmatprep.subr.mxu0 0.0
  %66 = vmatpush1.msra.mxu0 %v24
  %67 = vmatprep.subr.mxu0 0.0
  %68 = vmatpush1.msra.mxu0 %v25
  %69 = vmatprep.subr.mxu0 0.0
  %70 = vmatpush1.msra.mxu0 %v26
  %71 = vmatprep.subr.mxu0 0.0
  %72 = vmatpush1.msra.mxu0 %v27
  %73 = vmatprep.subr.mxu0 0.0
  %74 = vmatpush1.msra.mxu0 %v28
  %75 = vmatprep.subr.mxu0 0.0
  %76 = vmatpush1.msra.mxu0 %v29
  %77 = vmatprep.subr.mxu0 0.0
  %78 = vmatpush1.msra.mxu0 %v30
  %79 = vmatprep.subr.mxu0 0.0
  %80 = vmatpush1.msra.mxu0 %v31
  %81 = vmatprep.subr.mxu0 0.0
  %82 = vmatpush1.msra.mxu0 %v32
  %83 = vmatprep.subr.mxu0 0.0
  %84 = vmatpush1.msra.mxu0 %v33
  %85 = vmatprep.subr.mxu0 0.0
  %86 = vmatpush1.msra.mxu0 %v34
  %87 = vmatprep.subr.mxu0 0.0
  %88 = vmatpush1.msra.mxu0 %v35
  %89 = vmatprep.subr.mxu0 0.0
  %90 = vmatpush1.msra.mxu0 %v36
  %91 = vmatprep.subr.mxu0 0.0
  %92 = vmatpush1.msra.mxu0 %v37
  %93 = vmatprep.subr.mxu0 0.0
  %94 = vmatpush1.msra.mxu0 %v38
  %95 = vmatprep.subr.mxu0 0.0
  %96 = vmatpush1.msra.mxu0 %v39
  %97 = vmatprep.subr.mxu0 0.0
  %98 = vmatpush1.msra.mxu0 %v40
  %99 = vmatprep.subr.mxu0 0.0
  %100 = vmatpush1.msra.mxu0 %v41
  %101 = vmatprep.subr.mxu0 0.0
  %102 = vmatpush1.msra.mxu0 %v42
  %103 = vmatprep.subr.mxu0 0.0
  %104 = vmatpush1.msra.mxu0 %v43
  %105 = vmatprep.subr.mxu0 0.0
  %106 = vmatpush1.msra.mxu0 %v44
  %107 = vmatprep.subr.mxu0 0.0
  %108 = vmatpush1.msra.mxu0 %v45
  %109 = vmatprep.subr.mxu0 0.0
  %110 = vmatpush1.msra.mxu0 %v46
  %111 = vmatprep.subr.mxu0 0.0
  %112 = vmatpush1.msra.mxu0 %v47
  %113 = vmatprep.subr.mxu0 0.0
  %114 = vmatpush1.msra.mxu0 %v48
  %115 = vmatprep.subr.mxu0 0.0
  %116 = vmatpush1.msra.mxu0 %v49
  %117 = vmatprep.subr.mxu0 0.0
  %118 = vmatpush1.msra.mxu0 %v50
  %119 = vmatprep.subr.mxu0 0.0
  %120 = vmatpush1.msra.mxu0 %v51
  %121 = vmatprep.subr.mxu0 0.0
  %122 = vmatpush1.msra.mxu0 %v52
  %123 = vmatprep.subr.mxu0 0.0
  %124 = vmatpush1.msra.mxu0 %v53
  %125 = vmatprep.mubr.f32.mxu0 %v21
  %126 = vmatmul.mubr.f32.gmra.mrb[0].mxu0 %v20
  %v127 = vpop.f32.mrb[0].mxu0
  %v128 = vadd.f32 %v59, %v127
  %v129 = vpop.f32.mrb[0].mxu0
  %130 = vdwg.mxu0
  %vm131 = vcmask 261120
  %v132 = vsel %vm131, %v128, -inf
  %133 = vmax.xlane.f32.xlu0 %v132
  %v134 = vpop.xlane.xlu0 %133
  %v135 = vsub.f32 %v128, %v134
  %v136 = vmul.f32 %v135, 1.442695
  %v137 = vpow.pop %v136
  %v138 = vsel %vm131, %v137, 0.0
  %139 = vadd.xlane.f32.xlu0 %v138
  %v140 = vpop.xlane.xlu0 %139
  %v141 = vrcp.pop %v140
  %v142 = vmul.f32 %v137, %v141
  %v143 = vlog2.pop %v140
  %v144 = vmul.f32 %v143, 0.6931472
  %v145 = vsub.f32 %v135, %v144
  %v146 = vmul.f32 %v145, %v142
  %v147 = vld [vmem:[%s3] sm:$0xff]
  %v148 = vld [vmem:[%s3 + $0x8] sm:$0xff]
  %v149 = vld [vmem:[%s3 + $0x10] sm:$0xff]
  %v150 = vld [vmem:[%s3 + $0x18] sm:$0xff]
  %v151 = vld [vmem:[%s4] sm:$0xff]
  %v152 = vld [vmem:[%s4 + $0x8] sm:$0xff]
  %v153 = vld [vmem:[%s4 + $0x10] sm:$0xff]
  %v154 = vld [vmem:[%s4 + $0x18] sm:$0xff]
  %v156 = vsel %vm131, %v146, 0
  %158 = vmatprep.subr.mxu0 0.0
  %159 = vmatpush1.msra.mxu0 %v151
  %160 = vmatprep.subr.mxu0 0.0
  %161 = vmatpush1.msra.mxu0 %v152
  %162 = vmatprep.subr.mxu0 0.0
  %163 = vmatpush1.msra.mxu0 %v153
  %164 = vmatprep.subr.mxu0 0.0
  %165 = vmatpush1.msra.mxu0 %v154
  %166 = vmatprep.subr.mxu0 0.0
  %167 = vmatpush1.msra.mxu0 0.0
  %168 = vmatprep.subr.mxu0 0.0
  %169 = vmatpush1.msra.mxu0 0.0
  %170 = vmatprep.subr.mxu0 0.0
  %171 = vmatpush1.msra.mxu0 0.0
  %172 = vmatprep.subr.mxu0 0.0
  %173 = vmatpush1.msra.mxu0 0.0
  %174 = vmatprep.subr.mxu0 0.0
  %175 = vmatpush1.msra.mxu0 0.0
  %176 = vmatprep.subr.mxu0 0.0
  %177 = vmatpush1.msra.mxu0 0.0
  %178 = vmatprep.subr.mxu0 0.0
  %179 = vmatpush1.msra.mxu0 0.0
  %180 = vmatprep.subr.mxu0 0.0
  %181 = vmatpush1.msra.mxu0 0.0
  %182 = vmatprep.subr.mxu0 0.0
  %183 = vmatpush1.msra.mxu0 0.0
  %184 = vmatprep.subr.mxu0 0.0
  %185 = vmatpush1.msra.mxu0 0.0
  %186 = vmatprep.subr.mxu0 0.0
  %187 = vmatpush1.msra.mxu0 0.0
  %188 = vmatprep.subr.mxu0 0.0
  %189 = vmatpush1.msra.mxu0 0.0
  %190 = vmatprep.subr.mxu0 0.0
  %191 = vmatpush1.msra.mxu0 0.0
  %192 = vmatprep.subr.mxu0 0.0
  %193 = vmatpush1.msra.mxu0 0.0
  %194 = vmatprep.subr.mxu0 0.0
  %195 = vmatpush1.msra.mxu0 0.0
  %196 = vmatprep.subr.mxu0 0.0
  %197 = vmatpush1.msra.mxu0 0.0
  %198 = vmatprep.subr.mxu0 0.0
  %199 = vmatpush1.msra.mxu0 0.0
  %200 = vmatprep.subr.mxu0 0.0
  %201 = vmatpush1.msra.mxu0 0.0
  %202 = vmatprep.subr.mxu0 0.0
  %203 = vmatpush1.msra.mxu0 0.0
  %204 = vmatprep.subr.mxu0 0.0
  %205 = vmatpush1.msra.mxu0 0.0
  %206 = vmatprep.subr.mxu0 0.0
  %207 = vmatpush1.msra.mxu0 0.0
  %208 = vmatprep.subr.mxu0 0.0
  %209 = vmatpush1.msra.mxu0 0.0
  %210 = vmatprep.subr.mxu0 0.0
  %211 = vmatpush1.msra.mxu0 0.0
  %212 = vmatprep.subr.mxu0 0.0
  %213 = vmatpush1.msra.mxu0 0.0
  %214 = vmatprep.subr.mxu0 0.0
  %215 = vmatpush1.msra.mxu0 0.0
  %216 = vmatprep.subr.mxu0 0.0
  %217 = vmatpush1.msra.mxu0 0.0
  %218 = vmatprep.subr.mxu0 0.0
  %219 = vmatpush1.msra.mxu0 0.0
  %220 = vmatprep.subr.mxu0 0.0
  %221 = vmatpush1.msra.mxu0 0.0
  %222 = vmatprep.mubr.f32.mxu0 0.0
  %223 = vmatmul.mubr.f32.gmra.mrb[0].mxu0 %v156
  %v224 = vpop.f32.mrb[0].mxu0
  %v225 = vadd.f32 0.0, %v224
  %v226 = vpop.f32.mrb[0].mxu0
  %227 = vdwg.mxu0
  %v229 = vsel %vm131, %v142, 0
  %231 = vmatprep.subr.mxu0 0.0
  %232 = vmatpush1.msra.mxu0 %v147
  %233 = vmatprep.subr.mxu0 0.0
  %234 = vmatpush1.msra.mxu0 %v148
  %235 = vmatprep.subr.mxu0 0.0
  %236 = vmatpush1.msra.mxu0 %v149
  %237 = vmatprep.subr.mxu0 0.0
  %238 = vmatpush1.msra.mxu0 %v150
  %239 = vmatprep.subr.mxu0 0.0
  %240 = vmatpush1.msra.mxu0 0.0
  %241 = vmatprep.subr.mxu0 0.0
  %242 = vmatpush1.msra.mxu0 0.0
  %243 = vmatprep.subr.mxu0 0.0
  %244 = vmatpush1.msra.mxu0 0.0
  %245 = vmatprep.subr.mxu0 0.0
  %246 = vmatpush1.msra.mxu0 0.0
  %247 = vmatprep.subr.mxu0 0.0
  %248 = vmatpush1.msra.mxu0 0.0
  %249 = vmatprep.subr.mxu0 0.0
  %250 = vmatpush1.msra.mxu0 0.0
  %251 = vmatprep.subr.mxu0 0.0
  %252 = vmatpush1.msra.mxu0 0.0
  %253 = vmatprep.subr.mxu0 0.0
  %254 = vmatpush1.msra.mxu0 0.0
  %255 = vmatprep.subr.mxu0 0.0
  %256 = vmatpush1.msra.mxu0 0.0
  %257 = vmatprep.subr.mxu0 0.0
  %258 = vmatpush1.msra.mxu0 0.0
  %259 = vmatprep.subr.mxu0 0.0
  %260 = vmatpush1.msra.mxu0 0.0
  %261 = vmatprep.subr.mxu0 0.0
  %262 = vmatpush1.msra.mxu0 0.0
  %263 = vmatprep.subr.mxu0 0.0
  %264 = vmatpush1.msra.mxu0 0.0
  %265 = vmatprep.subr.mxu0 0.0
  %266 = vmatpush1.msra.mxu0 0.0
  %267 = vmatprep.subr.mxu0 0.0
  %268 = vmatpush1.msra.mxu0 0.0
  %269 = vmatprep.subr.mxu0 0.0
  %270 = vmatpush1.msra.mxu0 0.0
  %271 = vmatprep.subr.mxu0 0.0
  %272 = vmatpush1.msra.mxu0 0.0
  %273 = vmatprep.subr.mxu0 0.0
  %274 = vmatpush1.msra.mxu0 0.0
  %275 = vmatprep.subr.mxu0 0.0
  %276 = vmatpush1.msra.mxu0 0.0
  %277 = vmatprep.subr.mxu0 0.0
  %278 = vmatpush1.msra.mxu0 0.0
  %279 = vmatprep.subr.mxu0 0.0
  %280 = vmatpush1.msra.mxu0 0.0
  %281 = vmatprep.subr.mxu0 0.0
  %282 = vmatpush1.msra.mxu0 0.0
  %283 = vmatprep.subr.mxu0 0.0
  %284 = vmatpush1.msra.mxu0 0.0
  %285 = vmatprep.subr.mxu0 0.0
  %286 = vmatpush1.msra.mxu0 0.0
  %287 = vmatprep.subr.mxu0 0.0
  %288 = vmatpush1.msra.mxu0 0.0
  %289 = vmatprep.subr.mxu0 0.0
  %290 = vmatpush1.msra.mxu0 0.0
  %291 = vmatprep.subr.mxu0 0.0
  %292 = vmatpush1.msra.mxu0 0.0
  %293 = vmatprep.subr.mxu0 0.0
  %294 = vmatpush1.msra.mxu0 0.0
  %295 = vmatprep.mubr.f32.mxu0 0.0
  %296 = vmatmul.mubr.f32.gmra.mrb[0].mxu0 %v229
  %v297 = vpop.f32.mrb[0].mxu0
  %v298 = vadd.f32 %v225, %v297
  %v299 = vpop.f32.mrb[0].mxu0
  %300 = vdwg.mxu0
  %301 = vst [vmem:[%s5] sm:$0xff] %v298
  // Predicated region
  $region22: #{fpn_forward.1} parent=0 // pred_check
    _
  $region23: #{fpn_forward.1} parent=0 // pred_check_branch
    %303 = sbr.rel (0) target = $region25
  $region24: #{fpn_forward.1} parent=0 // pred_region
    _
  $region25: #{fpn_forward.1} parent=0 // pred_fallthru
    _
  // Predicated region
  $region26: #{fpn_forward.1} parent=0 // pred_check
    _
  $region27: #{fpn_forward.1} parent=0 // pred_check_branch
    %305 = sbr.rel (0) target = $region29
  $region28: #{fpn_forward.1} parent=0 // pred_region
    _
  $region29: #{fpn_forward.1} parent=0 // pred_fallthru
    _

</llo_original>
